<compile_context>
chip_gen: v6e
topology: v6e:2x2x1
jax: 0.10.0
libtpu: 0.0.40
codegen_flags: <defaults>
</compile_context>

<pallas_src>
import math
import jax
import jax.numpy as jnp
from jax.experimental import pallas as pl
from jax.experimental.pallas import tpu as pltpu


# ----------------------------------------------------------------------------
# Kernels
# ----------------------------------------------------------------------------
def _lstm_step_kernel(x_ref, h_ref, c_ref, w_ih_ref, w_hh_ref, b_ref,
                      h_out_ref, c_out_ref):
    """One LSTM cell step.  Two MXU dots (x @ W_ih^T, h @ W_hh^T), f32 acc,
    f32 elementwise."""
    H = c_ref.shape[1]
    mm_dtype = w_ih_ref.dtype
    gates = (jnp.dot(x_ref[...].astype(mm_dtype), w_ih_ref[...],
                     preferred_element_type=jnp.float32)
             + jnp.dot(h_ref[...].astype(mm_dtype), w_hh_ref[...],
                       preferred_element_type=jnp.float32)
             + b_ref[...])
    i_g = jax.nn.sigmoid(gates[:, 0 * H:1 * H])
    f_g = jax.nn.sigmoid(gates[:, 1 * H:2 * H])
    g_g = jnp.tanh(gates[:, 2 * H:3 * H])
    o_g = jax.nn.sigmoid(gates[:, 3 * H:4 * H])

    c_new = f_g * c_ref[...] + i_g * g_g
    h_new = o_g * jnp.tanh(c_new)
    h_out_ref[...] = h_new.astype(h_out_ref.dtype)
    c_out_ref[...] = c_new.astype(c_out_ref.dtype)


def _lstm_seq_kernel(x_ref, w_ih_ref, w_hh_ref, b_ref, h0_ref, c0_ref,
                     hseq_ref, hT_ref, cT_ref, h_scr, c_scr):
    """One (batch_tile, time_chunk) grid step: TC recurrent LSTM steps,
    statically unrolled.

    x_ref:    (TC, TB, IN)  raw inputs for this time chunk (streamed)
    w_ih_ref: (IN, 4H)      resident, single-buffered
    w_hh_ref: (H, 4H)       resident, single-buffered
    b_ref:    (1, 4H)       b_ih + b_hh, f32, resident
    h0/c0:    (TB, H)       initial state for this batch tile
    hseq_ref: (TC, TB, H)   per-step hidden outputs
    hT/cT:    (TB, H)       final state (written only on the last time chunk)
    h_scr/c_scr: (TB, H)    recurrent state carried across time chunks
    """
    t_chunk = pl.program_id(1)
    n_chunks = pl.num_programs(1)
    TC = x_ref.shape[0]
    H = h_scr.shape[1]

    @pl.when(t_chunk == 0)
    def _():
        h_scr[...] = h0_ref[...]
        c_scr[...] = c0_ref[...]

    mm_dtype = w_ih_ref.dtype
    w_ih = w_ih_ref[...]
    w_hh = w_hh_ref[...]
    bias = b_ref[...]

    h = h_scr[...]
    c = c_scr[...]
    # Static unroll over the time chunk: the whole chunk is one grid step, so
    # the recurrent dot is the only thing that must stay serial.
    for s in range(TC):
        x_t = x_ref[s]                                  # (TB, IN)
        gates = (jnp.dot(x_t.astype(mm_dtype), w_ih,
                         preferred_element_type=jnp.float32)
                 + jnp.dot(h.astype(mm_dtype), w_hh,
                           preferred_element_type=jnp.float32)
                 + bias)
        i_g = jax.nn.sigmoid(gates[:, 0 * H:1 * H])
        f_g = jax.nn.sigmoid(gates[:, 1 * H:2 * H])
        g_g = jnp.tanh(gates[:, 2 * H:3 * H])
        o_g = jax.nn.sigmoid(gates[:, 3 * H:4 * H])
        c = f_g * c + i_g * g_g
        h = o_g * jnp.tanh(c)
        hseq_ref[s] = h.astype(hseq_ref.dtype)

    h_scr[...] = h
    c_scr[...] = c

    @pl.when(t_chunk == n_chunks - 1)
    def _():
        hT_ref[...] = h.astype(hT_ref.dtype)
        cT_ref[...] = c.astype(cT_ref.dtype)


# ----------------------------------------------------------------------------
# Wrappers
# ----------------------------------------------------------------------------
def prepare_lstm_params(weight_ih, weight_hh, bias_ih, bias_hh,
                        matmul_dtype=jnp.float32):
    """Done ONCE per module (not per forward call).

    weight_ih: (4H, IN)  same layout as nn.LSTMCell.weight_ih
    weight_hh: (4H, H)
    bias_ih/bias_hh: (4H,)
    matmul_dtype: jnp.float32 (exact) or jnp.bfloat16 (fast MXU path on
        v6e/v7x; accumulation stays f32).

    Returns (W_ih^T (IN,4H), W_hh^T (H,4H), folded bias (1,4H) f32).
    """
    w_ih_t = jnp.asarray(weight_ih).T.astype(matmul_dtype)
    w_hh_t = jnp.asarray(weight_hh).T.astype(matmul_dtype)
    bias = (jnp.asarray(bias_ih).astype(jnp.float32)
            + jnp.asarray(bias_hh).astype(jnp.float32)).reshape(1, -1)
    return w_ih_t, w_hh_t, bias


def stateful_lstm_cell(x, state, params):
    """One forward() call of StatefulLSTMCell.

    x: (B, IN); state: None or (h, c) each (B, H).  Returns (h_new, c_new).
    """
    w_ih_t, w_hh_t, bias = params
    B = x.shape[0]
    H = w_hh_t.shape[0]
    if state is None:
        h = jnp.zeros((B, H), jnp.float32)
        c = jnp.zeros((B, H), jnp.float32)
    else:
        h, c = state
        h = h.astype(jnp.float32)
        c = c.astype(jnp.float32)

    h_new, c_new = pl.pallas_call(
        _lstm_step_kernel,
        out_shape=(jax.ShapeDtypeStruct((B, H), jnp.float32),
                   jax.ShapeDtypeStruct((B, H), jnp.float32)),
        in_specs=[pl.BlockSpec(memory_space=pltpu.MemorySpace.VMEM)] * 6,
        out_specs=(pl.BlockSpec(memory_space=pltpu.MemorySpace.VMEM),
                   pl.BlockSpec(memory_space=pltpu.MemorySpace.VMEM)),
    )(x.astype(jnp.float32), h, c, w_ih_t, w_hh_t, bias)
    return h_new, c_new


class StatefulLSTMCellPallas:
    """Host-side stateful wrapper mirroring StatefulLSTMCell semantics."""

    def __init__(self, params, hidden_size):
        self.params = params
        self.hidden_size = hidden_size
        self._state = None

    def reset(self):
        self._state = None

    @property
    def state(self):
        return self._state

    @state.setter
    def state(self, value):
        self._state = value

    def __call__(self, x):
        self._state = stateful_lstm_cell(x, self._state, self.params)
        return self._state


def _seq_vmem_bytes(tc, tb, in_size, hidden, w_itemsize, x_itemsize):
    four_h = 4 * hidden
    w = (in_size + hidden) * four_h * w_itemsize + four_h * 4   # Buffered(1)
    x = 2 * tc * tb * in_size * x_itemsize                      # double-buffer
    h_seq = 2 * tc * tb * hidden * 4
    state_io = 2 * 4 * tb * hidden * 4                          # h0,c0,hT,cT
    scratch = 2 * tb * hidden * 4
    return w + x + h_seq + state_io + scratch


def lstm_sequence(x_seq, state, params, *, time_block=8, batch_block=None):
    """T StatefulLSTMCell.forward() calls with the recurrence inside ONE
    pallas_call (time chunked, weights resident in VMEM).

    x_seq: (T, B, IN).  Returns (h_seq (T,B,H), (h_T, c_T)).
    Per-step c is not written back (final state only) to halve output traffic.
    """
    w_ih_t, w_hh_t, bias = params
    T, B, in_size = x_seq.shape
    H = w_hh_t.shape[0]
    mm_dtype = w_ih_t.dtype

    tb = B if batch_block is None else batch_block
    assert B % tb == 0, "batch_block must divide B"
    tc = max(1, min(time_block, T))
    while T % tc != 0:                 # largest divisor of T <= time_block
        tc -= 1

    if state is None:
        h0 = jnp.zeros((B, H), jnp.float32)
        c0 = jnp.zeros((B, H), jnp.float32)
    else:
        h0, c0 = state
        h0 = h0.astype(jnp.float32)
        c0 = c0.astype(jnp.float32)

    # Stream x in the matmul dtype (halves HBM traffic on the bf16 path).
    x_stream = x_seq.astype(mm_dtype)

    est = _seq_vmem_bytes(tc, tb, in_size, H,
                          jnp.dtype(mm_dtype).itemsize,
                          jnp.dtype(mm_dtype).itemsize)
    vmem_limit = int(min(max(2 * est + (4 << 20), 32 << 20), 64 << 20))

    grid = (B // tb, T // tc)          # (parallel batch tiles, sequential time)

    h_seq, h_T, c_T = pl.pallas_call(
        _lstm_seq_kernel,
        out_shape=(jax.ShapeDtypeStruct((T, B, H), jnp.float32),
                   jax.ShapeDtypeStruct((B, H), jnp.float32),
                   jax.ShapeDtypeStruct((B, H), jnp.float32)),
        grid_spec=pltpu.PrefetchScalarGridSpec(
            num_scalar_prefetch=0,
            grid=grid,
            in_specs=[
                pl.BlockSpec((tc, tb, in_size), lambda b, t: (t, b, 0)),
                pl.BlockSpec((in_size, 4 * H), lambda b, t: (0, 0),
                             pipeline_mode=pl.Buffered(1)),
                pl.BlockSpec((H, 4 * H), lambda b, t: (0, 0),
                             pipeline_mode=pl.Buffered(1)),
                pl.BlockSpec((1, 4 * H), lambda b, t: (0, 0),
                             pipeline_mode=pl.Buffered(1)),
                pl.BlockSpec((tb, H), lambda b, t: (b, 0)),
                pl.BlockSpec((tb, H), lambda b, t: (b, 0)),
            ],
            out_specs=[
                pl.BlockSpec((tc, tb, H), lambda b, t: (t, b, 0)),
                pl.BlockSpec((tb, H), lambda b, t: (b, 0)),
                pl.BlockSpec((tb, H), lambda b, t: (b, 0)),
            ],
            scratch_shapes=[pltpu.VMEM((tb, H), jnp.float32),
                            pltpu.VMEM((tb, H), jnp.float32)],
        ),
        compiler_params=pltpu.CompilerParams(
            dimension_semantics=("parallel", "arbitrary"),
            vmem_limit_bytes=vmem_limit),
    )(x_stream, w_ih_t, w_hh_t, bias, h0, c0)
    return h_seq, (h_T, c_T)


# ----------------------------------------------------------------------------
# Pure-JAX reference (nn.LSTMCell semantics)
# ----------------------------------------------------------------------------
def _reference_lstm_cell(x, state, weight_ih, weight_hh, bias_ih, bias_hh):
    B = x.shape[0]
    H = weight_hh.shape[1]
    if state is None:
        h = jnp.zeros((B, H), jnp.float32)
        c = jnp.zeros((B, H), jnp.float32)
    else:
        h, c = state
    gates = x @ weight_ih.T + bias_ih + h @ weight_hh.T + bias_hh
    i, f, g, o = jnp.split(gates, 4, axis=1)
    i, f, o = jax.nn.sigmoid(i), jax.nn.sigmoid(f), jax.nn.sigmoid(o)
    g = jnp.tanh(g)
    c_new = f * c + i * g
    h_new = o * jnp.tanh(c_new)
    return h_new, c_new


if __name__ == "__main__":
    B, IN, H, T = 2, 16, 32, 8

    key = jax.random.PRNGKey(0)
    kx, kseq, kwih, kwhh, kbih, kbhh = jax.random.split(key, 6)

    # nn.LSTMCell-style init: U(-1/sqrt(H), 1/sqrt(H))
    stdv = 1.0 / math.sqrt(H)
    weight_ih = jax.random.uniform(kwih, (4 * H, IN), jnp.float32, -stdv, stdv)
    weight_hh = jax.random.uniform(kwhh, (4 * H, H), jnp.float32, -stdv, stdv)
    bias_ih = jax.random.uniform(kbih, (4 * H,), jnp.float32, -stdv, stdv)
    bias_hh = jax.random.uniform(kbhh, (4 * H,), jnp.float32, -stdv, stdv)

    params_f32 = prepare_lstm_params(weight_ih, weight_hh, bias_ih, bias_hh)

    x = jax.random.normal(kx, (B, IN), jnp.float32)
    x_seq = jax.random.normal(kseq, (T, B, IN), jnp.float32)

    # --- single-step path (exact StatefulLSTMCell.forward semantics) -------
    cell = StatefulLSTMCellPallas(params_f32, H)
    h1, c1 = cell(x)              # state=None -> zeros
    h2, c2 = cell(x)              # stateful second call
    jax.block_until_ready((h2, c2))

    rh1, rc1 = _reference_lstm_cell(x, None, weight_ih, weight_hh, bias_ih, bias_hh)
    rh2, rc2 = _reference_lstm_cell(x, (rh1, rc1), weight_ih, weight_hh, bias_ih, bias_hh)
    assert jnp.allclose(h1, rh1, atol=1e-5), "h1 mismatch"
    assert jnp.allclose(c1, rc1, atol=1e-5), "c1 mismatch"
    assert jnp.allclose(h2, rh2, atol=1e-5), "h2 mismatch"
    assert jnp.allclose(c2, rc2, atol=1e-5), "c2 mismatch"

    # --- fused-sequence path (T forward() calls in ONE pallas_call) --------
    h_seq, (hT, cT) = lstm_sequence(x_seq, None, params_f32, time_block=4)
    jax.block_until_ready((h_seq, hT, cT))

    rstate = None
    for t in range(T):
        rstate = _reference_lstm_cell(x_seq[t], rstate, weight_ih, weight_hh,
                                      bias_ih, bias_hh)
        assert jnp.allclose(h_seq[t], rstate[0], atol=1e-4), f"h_seq[{t}] mismatch"
    assert jnp.allclose(hT, rstate[0], atol=1e-4), "final h mismatch"
    assert jnp.allclose(cT, rstate[1], atol=1e-4), "final c mismatch"

    # --- bf16 MXU operand path (f32 accumulation + f32 elementwise) --------
    params_bf16 = prepare_lstm_params(weight_ih, weight_hh, bias_ih, bias_hh,
                                      matmul_dtype=jnp.bfloat16)
    h_seq_bf, (hT_bf, cT_bf) = lstm_sequence(x_seq, None, params_bf16,
                                             time_block=4)
    jax.block_until_ready((h_seq_bf, hT_bf, cT_bf))
    assert jnp.allclose(h_seq_bf, h_seq, atol=1e-1), "bf16 h_seq mismatch"
    assert jnp.allclose(hT_bf, hT, atol=1e-1), "bf16 final h mismatch"

    print("KERNEL_OK")
</pallas_src>

<mosaic_0001>
module attributes {stable_mosaic.version = 11 : i64} {
  func.func @_lstm_step_kernel(%arg0: memref<2x16xf32, #tpu.memory_space<vmem>>, %arg1: memref<2x32xf32, #tpu.memory_space<vmem>>, %arg2: memref<2x32xf32, #tpu.memory_space<vmem>>, %arg3: memref<16x128xf32, #tpu.memory_space<vmem>>, %arg4: memref<32x128xf32, #tpu.memory_space<vmem>>, %arg5: memref<1x128xf32, #tpu.memory_space<vmem>>, %arg6: memref<2x32xf32, #tpu.memory_space<vmem>>, %arg7: memref<2x32xf32, #tpu.memory_space<vmem>>) attributes {dimension_semantics = [], scalar_prefetch = 0 : i64, scratch_operands = 0 : i64, tpu.core_type = #tpu.core_type<tc>} {
    %c0 = arith.constant 0 : index
    %c0_0 = arith.constant 0 : index
    %0 = vector.load %arg0[%c0, %c0_0] : memref<2x16xf32, #tpu.memory_space<vmem>>, vector<2x16xf32>
    %c0_1 = arith.constant 0 : index
    %c0_2 = arith.constant 0 : index
    %1 = vector.load %arg3[%c0_1, %c0_2] : memref<16x128xf32, #tpu.memory_space<vmem>>, vector<16x128xf32>
    %cst = arith.constant dense<0.000000e+00> : vector<2x128xf32>
    %2 = tpu.matmul %0, %1, %cst {dimension_numbers = #tpu.dot_dimension_numbers<[1], [0], [0], [1], [0, 0, 1, 1], [], []>} : vector<2x16xf32>, vector<16x128xf32>, vector<2x128xf32> -> vector<2x128xf32>
    %c0_3 = arith.constant 0 : index
    %c0_4 = arith.constant 0 : index
    %3 = vector.load %arg1[%c0_3, %c0_4] : memref<2x32xf32, #tpu.memory_space<vmem>>, vector<2x32xf32>
    %c0_5 = arith.constant 0 : index
    %c0_6 = arith.constant 0 : index
    %4 = vector.load %arg4[%c0_5, %c0_6] : memref<32x128xf32, #tpu.memory_space<vmem>>, vector<32x128xf32>
    %cst_7 = arith.constant dense<0.000000e+00> : vector<2x128xf32>
    %5 = tpu.matmul %3, %4, %cst_7 {dimension_numbers = #tpu.dot_dimension_numbers<[1], [0], [0], [1], [0, 0, 1, 1], [], []>} : vector<2x32xf32>, vector<32x128xf32>, vector<2x128xf32> -> vector<2x128xf32>
    %6 = arith.addf %2, %5 : vector<2x128xf32>
    %c0_8 = arith.constant 0 : index
    %c0_9 = arith.constant 0 : index
    %7 = vector.load %arg5[%c0_8, %c0_9] : memref<1x128xf32, #tpu.memory_space<vmem>>, vector<1x128xf32>
    %8 = vector.broadcast %7 : vector<1x128xf32> to vector<2x128xf32>
    %9 = arith.addf %6, %8 : vector<2x128xf32>
    %10 = vector.extract_strided_slice %9 {offsets = [0, 0], sizes = [2, 32], strides = [1, 1]} : vector<2x128xf32> to vector<2x32xf32>
    %11 = arith.negf %10 : vector<2x32xf32>
    %12 = math.exp %11 : vector<2x32xf32>
    %cst_10 = arith.constant 1.000000e+00 : f32
    %13 = vector.broadcast %cst_10 : f32 to vector<2x32xf32>
    %14 = arith.addf %13, %12 : vector<2x32xf32>
    %15 = arith.divf %13, %14 : vector<2x32xf32>
    %16 = vector.extract_strided_slice %9 {offsets = [0, 32], sizes = [2, 32], strides = [1, 1]} : vector<2x128xf32> to vector<2x32xf32>
    %17 = arith.negf %16 : vector<2x32xf32>
    %18 = math.exp %17 : vector<2x32xf32>
    %cst_11 = arith.constant 1.000000e+00 : f32
    %19 = vector.broadcast %cst_11 : f32 to vector<2x32xf32>
    %20 = arith.addf %19, %18 : vector<2x32xf32>
    %21 = arith.divf %19, %20 : vector<2x32xf32>
    %22 = vector.extract_strided_slice %9 {offsets = [0, 64], sizes = [2, 32], strides = [1, 1]} : vector<2x128xf32> to vector<2x32xf32>
    %23 = math.tanh %22 : vector<2x32xf32>
    %24 = vector.extract_strided_slice %9 {offsets = [0, 96], sizes = [2, 32], strides = [1, 1]} : vector<2x128xf32> to vector<2x32xf32>
    %25 = arith.negf %24 : vector<2x32xf32>
    %26 = math.exp %25 : vector<2x32xf32>
    %cst_12 = arith.constant 1.000000e+00 : f32
    %27 = vector.broadcast %cst_12 : f32 to vector<2x32xf32>
    %28 = arith.addf %27, %26 : vector<2x32xf32>
    %29 = arith.divf %27, %28 : vector<2x32xf32>
    %c0_13 = arith.constant 0 : index
    %c0_14 = arith.constant 0 : index
    %30 = vector.load %arg2[%c0_13, %c0_14] : memref<2x32xf32, #tpu.memory_space<vmem>>, vector<2x32xf32>
    %31 = arith.mulf %21, %30 : vector<2x32xf32>
    %32 = arith.mulf %15, %23 : vector<2x32xf32>
    %33 = arith.addf %31, %32 : vector<2x32xf32>
    %34 = math.tanh %33 : vector<2x32xf32>
    %35 = arith.mulf %29, %34 : vector<2x32xf32>
    %c0_15 = arith.constant 0 : index
    %c0_16 = arith.constant 0 : index
    %36 = vector.load %arg6[%c0_15, %c0_16] : memref<2x32xf32, #tpu.memory_space<vmem>>, vector<2x32xf32>
    tpu.vector_store %arg6[%c0_15, %c0_16], %35 {strides = array<i32>} : memref<2x32xf32, #tpu.memory_space<vmem>>, vector<2x32xf32>,
    %c0_17 = arith.constant 0 : index
    %c0_18 = arith.constant 0 : index
    %37 = vector.load %arg7[%c0_17, %c0_18] : memref<2x32xf32, #tpu.memory_space<vmem>>, vector<2x32xf32>
    tpu.vector_store %arg7[%c0_17, %c0_18], %33 {strides = array<i32>} : memref<2x32xf32, #tpu.memory_space<vmem>>, vector<2x32xf32>,
    return
  }
}

</mosaic_0001>

<llo_original>
// kernel: tpu_custom_call.1
$region0: #{tpu_custom_call.1}
  #allocation0 [shape = 'u32[]', space=smem, size = 0x4, offset = 0x4, fixed_abs, tag = 'smem constant byte address 0x4 - core index']
  #allocation1 [shape = 'u32[144,128]{1,0:T(1,128)}', space=vmem, size = 0x12000, scoped, tag = 'internal scratch']
  %s0 = inlined_call_operand.hbm [shape: f32[2,16], index: 0, kind: input, shape index: {}]
  %s1 = inlined_call_operand.hbm [shape: f32[2,32], index: 1, kind: input, shape index: {}]
  %s2 = inlined_call_operand.vmem [shape: f32[2,32], index: 2, kind: input, shape index: {}]
  %s3 = inlined_call_operand.hbm [shape: f32[16,128], index: 3, kind: input, shape index: {}]
  %s4 = inlined_call_operand.hbm [shape: f32[32,128], index: 4, kind: input, shape index: {}]
  %s5 = inlined_call_operand.vmem [shape: f32[1,128], index: 5, kind: input, shape index: {}]
  %s6 = inlined_call_operand.hbm [shape: f32[2,32], index: 6, kind: output, shape index: {0}]
  %s7 = inlined_call_operand.hbm [shape: f32[2,32], index: 7, kind: output, shape index: {1}]
  %8 = xla_tuple %s6, %s7
  %s9 = sld [smem:[#allocation0]]
  $region58: #{tpu_custom_call.1} parent=0
    _
  %s11 = ssub.s32 1, %s9
  %s12 = scalar_select 0, %s11, %s9
  $region1: #{tpu_custom_call.1} parent=0
    #allocation2 [shape = 'u8[1024]{0}', space=vmem, size = 0x400, scoped, tag = 'input window, operand 0, single buffered']
    #allocation3 [shape = 's32[1]{0}', space=sflag, size = 0x4, scoped, tag = 'scoped memory for tpu_custom_call.1']
    #allocation4 [shape = 's32[1]{0}', space=sflag, size = 0x4, scoped, tag = 'scoped memory for tpu_custom_call.1']
    #allocation5 [shape = 'u8[1024]{0}', space=vmem, size = 0x400, scoped, tag = 'input window, operand 1, single buffered']
    #allocation6 [shape = 's32[1]{0}', space=sflag, size = 0x4, scoped, tag = 'scoped memory for tpu_custom_call.1']
    #allocation7 [shape = 'u8[8192]{0}', space=vmem, size = 0x2000, scoped, tag = 'input window, operand 3, single buffered']
    #allocation8 [shape = 'u8[16384]{0}', space=vmem, size = 0x4000, scoped, tag = 'input window, operand 4, single buffered']
    #allocation9 [shape = 's32[1]{0}', space=sflag, size = 0x4, scoped, tag = 'scoped memory for tpu_custom_call.1']
    #allocation10 [shape = 'u8[1024]{0}', space=vmem, size = 0x400, scoped, tag = 'output window, operand 0, single buffered']
    #allocation11 [shape = 'u8[1024]{0}', space=vmem, size = 0x400, scoped, tag = 'output window, operand 1, single buffered']
    #allocation12 [shape = 's32[1]{0}', space=sflag, size = 0x4, scoped, tag = 'scoped memory for tpu_custom_call.1']
    %13 = vsyncpa [#allocation3], 0
    %14 = vsyncpa [#allocation6], 0
    %15 = vsyncpa [#allocation9], 0
    %16 = vsyncpa [#allocation4], 0
    %17 = vsyncpa [#allocation12], 0
    // Predicated region
    $region2: #{tpu_custom_call.1} parent=1 // pred_check
      _
    $region3: #{tpu_custom_call.1} parent=1 // pred_check_branch
      %19 = sbr.rel (0) target = $region5
    $region4: #{tpu_custom_call.1} parent=1 // pred_region
      %s21 = ssub.s32 32, 32
      %22 = vsyncadd [#allocation3], %s21
      %s24 = sshll.u32 [#allocation2], 4
      %s25 = int_to_ptr.vmem [resolvable:$true] %s24
      %27 = dma.hbm_to_vmem [thread:$0]  %s0, 32, %s25, [#allocation3]
    $region5: #{tpu_custom_call.1} parent=1 // pred_fallthru
      _
    // Predicated region
    $region6: #{tpu_custom_call.1} parent=1 // pred_check
      _
    $region7: #{tpu_custom_call.1} parent=1 // pred_check_branch
      %29 = sbr.rel (0) target = $region9
    $region8: #{tpu_custom_call.1} parent=1 // pred_region
      %s31 = ssub.s32 32, 32
      %32 = vsyncadd [#allocation6], %s31
      %s34 = sshll.u32 [#allocation5], 4
      %s35 = int_to_ptr.vmem [resolvable:$true] %s34
      %37 = dma.hbm_to_vmem [thread:$0]  %s1, 32, %s35, [#allocation6]
    $region9: #{tpu_custom_call.1} parent=1 // pred_fallthru
      _
    // Predicated region
    $region10: #{tpu_custom_call.1} parent=1 // pred_check
      _
    $region11: #{tpu_custom_call.1} parent=1 // pred_check_branch
      %39 = sbr.rel (0) target = $region13
    $region12: #{tpu_custom_call.1} parent=1 // pred_region
      _
    $region13: #{tpu_custom_call.1} parent=1 // pred_fallthru
      _
    // Predicated region
    $region14: #{tpu_custom_call.1} parent=1 // pred_check
      _
    $region15: #{tpu_custom_call.1} parent=1 // pred_check_branch
      %41 = sbr.rel (0) target = $region17
    $region16: #{tpu_custom_call.1} parent=1 // pred_region
      %s43 = ssub.s32 256, 256
      %44 = vsyncadd [#allocation6], %s43
      %s45 = sshll.u32 [#allocation7], 4
      %s46 = int_to_ptr.vmem [resolvable:$true] %s45
      %51 = dma.hbm_to_vmem [thread:$0]  %s3, 256, %s46, [#allocation6], 128, 128, 8
    $region17: #{tpu_custom_call.1} parent=1 // pred_fallthru
      _
    // Predicated region
    $region18: #{tpu_custom_call.1} parent=1 // pred_check
      _
    $region19: #{tpu_custom_call.1} parent=1 // pred_check_branch
      %53 = sbr.rel (0) target = $region21
    $region20: #{tpu_custom_call.1} parent=1 // pred_region
      %s55 = ssub.s32 512, 512
      %56 = vsyncadd [#allocation9], %s55
      %s57 = sshll.u32 [#allocation8], 4
      %s58 = int_to_ptr.vmem [resolvable:$true] %s57
      %63 = dma.hbm_to_vmem [thread:$0]  %s4, 512, %s58, [#allocation9], 128, 128, 8
    $region21: #{tpu_custom_call.1} parent=1 // pred_fallthru
      _
    // Predicated region
    $region22: #{tpu_custom_call.1} parent=1 // pred_check
      _
    $region23: #{tpu_custom_call.1} parent=1 // pred_check_branch
      %65 = sbr.rel (0) target = $region25
    $region24: #{tpu_custom_call.1} parent=1 // pred_region
      _
    $region25: #{tpu_custom_call.1} parent=1 // pred_fallthru
      _
    // Predicated region
    $region26: #{tpu_custom_call.1} parent=1 // pred_check
      _
    $region27: #{tpu_custom_call.1} parent=1 // pred_check_branch
      %67 = sbr.rel (0) target = $region29
    $region28: #{tpu_custom_call.1} parent=1 // pred_region
      %68 = dma.done [#allocation3], 32
    $region29: #{tpu_custom_call.1} parent=1 // pred_fallthru
      _
    // Predicated region
    $region30: #{tpu_custom_call.1} parent=1 // pred_check
      _
    $region31: #{tpu_custom_call.1} parent=1 // pred_check_branch
      %70 = sbr.rel (0) target = $region33
    $region32: #{tpu_custom_call.1} parent=1 // pred_region
      %71 = dma.done [#allocation6], 32
    $region33: #{tpu_custom_call.1} parent=1 // pred_fallthru
      _
    // Predicated region
    $region34: #{tpu_custom_call.1} parent=1 // pred_check
      _
    $region35: #{tpu_custom_call.1} parent=1 // pred_check_branch
      %73 = sbr.rel (0) target = $region37
    $region36: #{tpu_custom_call.1} parent=1 // pred_region
      %74 = dma.done [#allocation6], 256
    $region37: #{tpu_custom_call.1} parent=1 // pred_fallthru
      _
    // Predicated region
    $region38: #{tpu_custom_call.1} parent=1 // pred_check
      _
    $region39: #{tpu_custom_call.1} parent=1 // pred_check_branch
      %76 = sbr.rel (0) target = $region41
    $region40: #{tpu_custom_call.1} parent=1 // pred_region
      %77 = dma.done [#allocation9], 512
    $region41: #{tpu_custom_call.1} parent=1 // pred_fallthru
      _
    %v78 = vld [vmem:[#allocation2] sm:$0x3]
    %v79 = vld [vmem:[#allocation7] sm:$0xff]
    %v80 = vld [vmem:[#allocation7 + $0x8] sm:$0xff]
    %v81 = vld [vmem:[#allocation5] sm:$0x3]
    %v82 = vld [vmem:[#allocation8] sm:$0xff]
    %v83 = vld [vmem:[#allocation8 + $0x8] sm:$0xff]
    %v84 = vld [vmem:[#allocation8 + $0x10] sm:$0xff]
    %v85 = vld [vmem:[#allocation8 + $0x18] sm:$0xff]
    %vm86 = vcmask 261120
    %v88 = vsel %vm86, %v81, 0
    %90 = vmatprep.subr.mxu0 0.0
    %91 = vmatpush1.msra.mxu0 0.0
    %92 = vmatprep.subr.mxu0 0.0
    %93 = vmatpush1.msra.mxu0 0.0
    %94 = vmatprep.subr.mxu0 0.0
    %95 = vmatpush1.msra.mxu0 0.0
    %96 = vmatprep.subr.mxu0 0.0
    %97 = vmatpush1.msra.mxu0 0.0
    %98 = vmatprep.subr.mxu0 0.0
    %99 = vmatpush1.msra.mxu0 0.0
    %100 = vmatprep.subr.mxu0 0.0
    %101 = vmatpush1.msra.mxu0 0.0
    %102 = vmatprep.subr.mxu0 0.0
    %103 = vmatpush1.msra.mxu0 0.0
    %104 = vmatprep.subr.mxu0 0.0
    %105 = vmatpush1.msra.mxu0 0.0
    %106 = vmatprep.subr.mxu0 0.0
    %107 = vmatpush1.msra.mxu0 0.0
    %108 = vmatprep.subr.mxu0 0.0
    %109 = vmatpush1.msra.mxu0 0.0
    %110 = vmatprep.subr.mxu0 0.0
    %111 = vmatpush1.msra.mxu0 0.0
    %112 = vmatprep.subr.mxu0 0.0
    %113 = vmatpush1.msra.mxu0 0.0
    %114 = vmatprep.subr.mxu0 0.0
    %115 = vmatpush1.msra.mxu0 %v85
    %116 = vmatprep.subr.mxu0 0.0
    %117 = vmatpush1.msra.mxu0 %v84
    %118 = vmatprep.subr.mxu0 0.0
    %119 = vmatpush1.msra.mxu0 %v83
    %120 = vmatprep.subr.mxu0 0.0
    %121 = vmatpush1.msra.mxu0 %v82
    %122 = vmatprep.subr.mxu0 0.0
    %123 = vmatpush2.msra.mxu0 0.0
    %124 = vmatprep.subr.mxu0 0.0
    %125 = vmatpush2.msra.mxu0 0.0
    %126 = vmatprep.subr.mxu0 0.0
    %127 = vmatpush2.msra.mxu0 0.0
    %128 = vmatprep.subr.mxu0 0.0
    %129 = vmatpush2.msra.mxu0 0.0
    %130 = vmatprep.subr.mxu0 0.0
    %131 = vmatpush2.msra.mxu0 0.0
    %132 = vmatprep.subr.mxu0 0.0
    %133 = vmatpush2.msra.mxu0 0.0
    %134 = vmatprep.subr.mxu0 0.0
    %135 = vmatpush2.msra.mxu0 0.0
    %136 = vmatprep.subr.mxu0 0.0
    %137 = vmatpush2.msra.mxu0 0.0
    %138 = vmatprep.subr.mxu0 0.0
    %139 = vmatpush2.msra.mxu0 0.0
    %140 = vmatprep.subr.mxu0 0.0
    %141 = vmatpush2.msra.mxu0 0.0
    %142 = vmatprep.subr.mxu0 0.0
    %143 = vmatpush2.msra.mxu0 0.0
    %144 = vmatprep.subr.mxu0 0.0
    %145 = vmatpush2.msra.mxu0 0.0
    %146 = vmatprep.subr.mxu0 0.0
    %147 = vmatpush2.msra.mxu0 0.0
    %148 = vmatprep.subr.mxu0 0.0
    %149 = vmatpush2.msra.mxu0 0.0
    %150 = vmatprep.subr.mxu0 0.0
    %151 = vmatpush2.msra.mxu0 0.0
    %152 = vmatprep.subr.mxu0 0.0
    %153 = vmatpush2.msra.mxu0 0.0
    %154 = vmatprep.mubr.f32.mxu0 0.0
    %155 = vmatmul.mubr.f32.gmra.mxu0 %v88
    %v156 = vpop.f32.mrf.mxu0
    %v157 = vadd.f32 0.0, %v156
    %v158 = vpop.f32.mrf.mxu0
    %159 = vdwg.mxu0
    %vm160 = vcmask 130048
    %v162 = vsel %vm160, %v78, 0
    %164 = vmatprep.subr.mxu0 0.0
    %165 = vmatpush1.msra.mxu0 0.0
    %166 = vmatprep.subr.mxu0 0.0
    %167 = vmatpush1.msra.mxu0 0.0
    %168 = vmatprep.subr.mxu0 0.0
    %169 = vmatpush1.msra.mxu0 0.0
    %170 = vmatprep.subr.mxu0 0.0
    %171 = vmatpush1.msra.mxu0 0.0
    %172 = vmatprep.subr.mxu0 0.0
    %173 = vmatpush1.msra.mxu0 0.0
    %174 = vmatprep.subr.mxu0 0.0
    %175 = vmatpush1.msra.mxu0 0.0
    %176 = vmatprep.subr.mxu0 0.0
    %177 = vmatpush1.msra.mxu0 0.0
    %178 = vmatprep.subr.mxu0 0.0
    %179 = vmatpush1.msra.mxu0 0.0
    %180 = vmatprep.subr.mxu0 0.0
    %181 = vmatpush1.msra.mxu0 0.0
    %182 = vmatprep.subr.mxu0 0.0
    %183 = vmatpush1.msra.mxu0 0.0
    %184 = vmatprep.subr.mxu0 0.0
    %185 = vmatpush1.msra.mxu0 0.0
    %186 = vmatprep.subr.mxu0 0.0
    %187 = vmatpush1.msra.mxu0 0.0
    %188 = vmatprep.subr.mxu0 0.0
    %189 = vmatpush1.msra.mxu0 0.0
    %190 = vmatprep.subr.mxu0 0.0
    %191 = vmatpush1.msra.mxu0 0.0
    %192 = vmatprep.subr.mxu0 0.0
    %193 = vmatpush1.msra.mxu0 %v80
    %194 = vmatprep.subr.mxu0 0.0
    %195 = vmatpush1.msra.mxu0 %v79
    %196 = vmatprep.subr.mxu0 0.0
    %197 = vmatpush2.msra.mxu0 0.0
    %198 = vmatprep.subr.mxu0 0.0
    %199 = vmatpush2.msra.mxu0 0.0
    %200 = vmatprep.subr.mxu0 0.0
    %201 = vmatpush2.msra.mxu0 0.0
    %202 = vmatprep.subr.mxu0 0.0
    %203 = vmatpush2.msra.mxu0 0.0
    %204 = vmatprep.subr.mxu0 0.0
    %205 = vmatpush2.msra.mxu0 0.0
    %206 = vmatprep.subr.mxu0 0.0
    %207 = vmatpush2.msra.mxu0 0.0
    %208 = vmatprep.subr.mxu0 0.0
    %209 = vmatpush2.msra.mxu0 0.0
    %210 = vmatprep.subr.mxu0 0.0
    %211 = vmatpush2.msra.mxu0 0.0
    %212 = vmatprep.subr.mxu0 0.0
    %213 = vmatpush2.msra.mxu0 0.0
    %214 = vmatprep.subr.mxu0 0.0
    %215 = vmatpush2.msra.mxu0 0.0
    %216 = vmatprep.subr.mxu0 0.0
    %217 = vmatpush2.msra.mxu0 0.0
    %218 = vmatprep.subr.mxu0 0.0
    %219 = vmatpush2.msra.mxu0 0.0
    %220 = vmatprep.subr.mxu0 0.0
    %221 = vmatpush2.msra.mxu0 0.0
    %222 = vmatprep.subr.mxu0 0.0
    %223 = vmatpush2.msra.mxu0 0.0
    %224 = vmatprep.subr.mxu0 0.0
    %225 = vmatpush2.msra.mxu0 0.0
    %226 = vmatprep.subr.mxu0 0.0
    %227 = vmatpush2.msra.mxu0 0.0
    %228 = vmatprep.mubr.f32.mxu0 0.0
    %229 = vmatmul.mubr.f32.gmra.mxu0 %v162
    %v230 = vpop.f32.mrf.mxu0
    %v231 = vadd.f32 %v157, %v230
    %v232 = vpop.f32.mrf.mxu0
    %233 = vdwg.mxu0
    %v234 = vld [vmem:[%s5] sm:$0x1]
    %v236 = vlaneseq
    %v237 = vshrl.u32 %v236, 7
    %v238 = vsub.s32 0, %v237
    %v239 = vrot.slane %v234, %v238
    %v241 = vadd.f32 %v231, %v239
    %v242 = vxor.u32 %v241, 2147483648
    %v243 = vmul.f32 %v242, 1.442695
    %v244 = vpow.pop %v243
    %v245 = vadd.f32 %v244, 1.0
    %v246 = vrcp.pop %v245
    %v247 = vmul.f32 1.0, %v246
    %v248 = vtanh.pop %v241
    %v249 = vld [vmem:[%s2] sm:$0x3]
    %251 = vrot.lane.b32.xlu0 %v249, 32
    %v252 = vpop.permute.xlu0 %251
    %v254 = vmul.f32 %v247, %v252
    %256 = vrot.lane.b32.xlu0 %v248, 64
    %v257 = vpop.permute.xlu0 %256
    %v259 = vmul.f32 %v247, %v257
    %261 = vrot.lane.b32.xlu0 %v259, 32
    %v262 = vpop.permute.xlu0 %261
    %v264 = vadd.f32 %v254, %v262
    %v265 = vtanh.pop %v264
    %267 = vrot.lane.b32.xlu0 %v265, 64
    %v268 = vpop.permute.xlu0 %267
    %v270 = vmul.f32 %v247, %v268
    %272 = vrot.lane.b32.xlu0 %v270, 32
    %v273 = vpop.permute.xlu0 %272
    %vm275 = vcmask 254976
    %276 = vst.msk [vmem:[#allocation10] sm:$0x3] %vm275, %v273
    %278 = vrot.lane.b32.xlu0 %v264, 96
    %v279 = vpop.permute.xlu0 %278
    %281 = vst.msk [vmem:[#allocation11] sm:$0x3] %vm275, %v279
    // Predicated region
    $region42: #{tpu_custom_call.1} parent=1 // pred_check
      _
    $region43: #{tpu_custom_call.1} parent=1 // pred_check_branch
      %283 = sbr.rel (0) target = $region45
    $region44: #{tpu_custom_call.1} parent=1 // pred_region
      %s285 = ssub.s32 32, 32
      %286 = vsyncadd [#allocation4], %s285
      %s288 = sshll.u32 [#allocation10], 4
      %s289 = int_to_ptr.vmem [resolvable:$true] %s288
      %291 = dma.vmem_to_hbm [thread:$0]  %s289, 32, %s6, [#allocation4]
    $region45: #{tpu_custom_call.1} parent=1 // pred_fallthru
      _
    // Predicated region
    $region46: #{tpu_custom_call.1} parent=1 // pred_check
      _
    $region47: #{tpu_custom_call.1} parent=1 // pred_check_branch
      %293 = sbr.rel (0) target = $region49
    $region48: #{tpu_custom_call.1} parent=1 // pred_region
      %s295 = ssub.s32 32, 32
      %296 = vsyncadd [#allocation12], %s295
      %s298 = sshll.u32 [#allocation11], 4
      %s299 = int_to_ptr.vmem [resolvable:$true] %s298
      %301 = dma.vmem_to_hbm [thread:$0]  %s299, 32, %s7, [#allocation12]
    $region49: #{tpu_custom_call.1} parent=1 // pred_fallthru
      _
    // Predicated region
    $region50: #{tpu_custom_call.1} parent=1 // pred_check
      _
    $region51: #{tpu_custom_call.1} parent=1 // pred_check_branch
      %303 = sbr.rel (0) target = $region53
    $region52: #{tpu_custom_call.1} parent=1 // pred_region
      %304 = dma.done [#allocation4], 32
    $region53: #{tpu_custom_call.1} parent=1 // pred_fallthru
      _
    // Predicated region
    $region54: #{tpu_custom_call.1} parent=1 // pred_check
      _
    $region55: #{tpu_custom_call.1} parent=1 // pred_check_branch
      %306 = sbr.rel (0) target = $region57
    $region56: #{tpu_custom_call.1} parent=1 // pred_region
      %307 = dma.done [#allocation12], 32
    $region57: #{tpu_custom_call.1} parent=1 // pred_fallthru
      _
    %308 = vsyncpa [#allocation3], 1
    %309 = vsyncpa [#allocation6], 1
    %310 = vsyncpa [#allocation9], 1
    %311 = vsyncpa [#allocation4], 1
    %312 = vsyncpa [#allocation12], 1

</llo_original>
